<compile_context>
chip_gen: v7x
topology: tpu7x:2x2x1
jax: 0.10.0
libtpu: 0.0.40
codegen_flags: <defaults>
</compile_context>

<pallas_src>
import jax
import jax.numpy as jnp
from jax import lax
from jax.experimental import pallas as pl
from jax.experimental.pallas import tpu as pltpu

B, T, R = 2, 8, 16        # batch, args.time_points, args.regions
SEM, CLS = 4, 3           # args.semantic, args.classes
BT = B * T
FF = 4 * R                # FFN width of the stand-in backbone encoder layer
LN_EPS = 1e-5
SCALE = 1.0 / float(R) ** 0.5
LANE = 128                # lane-dense output slab width

# ---- packed-slab geometry (all offsets are multiples of 8 sublanes) ----
# wA (R, 160): lane-concat  [ wqkv(3R) | wo(R) | ffn_w1(FF) | wh1(2R) ]
WA_LANES = 3 * R + R + FF + 2 * R                 # 160
# wB (136, 16): sublane-stack
OFF_W2 = 0                                        # ffn_w2           (FF, R)
OFF_W2H = FF                                      # stage-2 blockdiag (2R, SEM+1)
OFF_WC3 = FF + 2 * R                              # wc3 tiled        (BT, CLS)
OFF_SEL = FF + 2 * R + BT                         # selector         (B, BT) pad->8 rows
OFF_MASK = OFF_SEL + 8                            # additive attn mask (BT, BT)
WB_ROWS = OFF_MASK + BT                           # 136
WB_LANES = max(R, BT, SEM + 1, CLS)               # 16
# vecs (16, 64): one bias / LN vector per sublane row, zero-padded to 64 lanes
VEC_LANES = FF                                    # 64


# ---------------------------------------------------------------------------
# One fused kernel: backbone stand-in + regressor + classifier (+ softmax).
# TODO(synk): the full HuggingFace TimeSeriesTransformerModel (lagged features,
# value scaling, attention masks, encoder/decoder stacks, sample generation)
# has no clean Pallas equivalent; a single encoder layer stands in for it.
# ---------------------------------------------------------------------------
def _ts_transformer_kernel(x_ref, wa_ref, wb_ref, vec_ref, o_ref):
    x2 = x_ref[...]                                                   # (BT, R)

    # ---- static views into the packed parameter slabs ----
    wqkv = wa_ref[:, 0:3 * R]                                         # (R, 3R)
    wo = wa_ref[:, 3 * R:4 * R]                                       # (R, R)
    w1 = wa_ref[:, 4 * R:4 * R + FF]                                  # (R, FF)
    wh1 = wa_ref[:, 4 * R + FF:4 * R + FF + 2 * R]                    # (R, 2R)

    w2 = wb_ref[OFF_W2:OFF_W2 + FF, 0:R]                              # (FF, R)
    w2h = wb_ref[OFF_W2H:OFF_W2H + 2 * R, 0:SEM + 1]                  # (2R, SEM+1) blockdiag
    wc3r = wb_ref[OFF_WC3:OFF_WC3 + BT, 0:CLS]                        # (BT, CLS)
    sel = wb_ref[OFF_SEL:OFF_SEL + B, 0:BT]                           # (B, BT)
    amask = wb_ref[OFF_MASK:OFF_MASK + BT, 0:BT]                      # (BT, BT) 0 / -1e30

    bqkv = vec_ref[0:1, 0:3 * R]
    bo = vec_ref[1:2, 0:R]
    g1 = vec_ref[2:3, 0:R]
    be1 = vec_ref[3:4, 0:R]
    b1 = vec_ref[4:5, 0:FF]
    b2 = vec_ref[5:6, 0:R]
    g2 = vec_ref[6:7, 0:R]
    be2 = vec_ref[7:8, 0:R]
    bh1 = vec_ref[8:9, 0:2 * R]
    b2h = vec_ref[9:10, 0:SEM + 1]
    bc3 = vec_ref[10:11, 0:CLS]

    # ---- fused QKV projection: one (BT,R)@(R,3R) matmul ----
    qkv = jnp.dot(x2, wqkv, preferred_element_type=jnp.float32) + bqkv
    q = qkv[:, :R]
    k = qkv[:, R:2 * R]
    v = qkv[:, 2 * R:]

    # ---- block-diagonal (per-batch) self-attention, precomputed additive mask ----
    scores = pl.dot(q, k, trans_b=True) * SCALE + amask               # (BT, BT)
    m = jnp.max(scores, axis=-1, keepdims=True)
    p = jnp.exp(scores - m)
    attn = p * pl.reciprocal(jnp.sum(p, axis=-1, keepdims=True), approx=True)
    ctx = jnp.dot(attn, v, preferred_element_type=jnp.float32)        # (BT, R)

    h = x2 + jnp.dot(ctx, wo, preferred_element_type=jnp.float32) + bo
    mu = jnp.mean(h, axis=-1, keepdims=True)
    var = jnp.mean((h - mu) ** 2, axis=-1, keepdims=True)
    h = (h - mu) * lax.rsqrt(var + LN_EPS) * g1 + be1

    f = jnp.maximum(jnp.dot(h, w1, preferred_element_type=jnp.float32) + b1, 0.0)
    f = jnp.dot(f, w2, preferred_element_type=jnp.float32) + b2

    y = h + f
    mu2 = jnp.mean(y, axis=-1, keepdims=True)
    var2 = jnp.mean((y - mu2) ** 2, axis=-1, keepdims=True)
    seq = (y - mu2) * lax.rsqrt(var2 + LN_EPS) * g2 + be2             # (BT, R)

    # ---- heads stage 1: regressor & classifier Linear(R,R) fused, ReLU,
    #      Dropout(eval)=identity ----
    hh = jnp.maximum(jnp.dot(seq, wh1, preferred_element_type=jnp.float32) + bh1,
                     0.0)                                             # (BT, 2R)

    # ---- heads stage 2 fused: block-diag [[wr2,0],[0,wc2]] -> one matmul ----
    out2 = jnp.dot(hh, w2h, preferred_element_type=jnp.float32) + b2h  # (BT, SEM+1)
    logits1 = out2[:, :SEM]                                           # (BT, SEM)
    c2 = out2[:, SEM:SEM + 1]                                         # (BT, 1)

    # classifier tail: Transpose(-1,-2) + Linear(T, CLS) as a selector matmul:
    #   c3[b,c] = sum_t c2[b*T+t] * wc3[t,c] + bc3[c]
    u = c2 * wc3r                                                     # (BT, CLS)
    c3 = jnp.dot(sel, u, preferred_element_type=jnp.float32) + bc3    # (B, CLS)

    # F.softmax with implicit dim on a 3-D (B,1,CLS) tensor -> dim=0 (batch axis)
    # exact reciprocal here (final probabilities must sum to 1)
    m2 = jnp.max(c3, axis=0, keepdims=True)
    e2 = jnp.exp(c3 - m2)
    probs2 = e2 / jnp.sum(e2, axis=0, keepdims=True)                  # (B, CLS)

    # ---- concat-free lane-dense output slab: zero once + two sub-slice stores ----
    o_ref[...] = jnp.zeros((BT, LANE), jnp.float32)
    o_ref[:, 0:SEM] = logits1
    o_ref[0:B, SEM:SEM + CLS] = probs2


def _vmem_spec():
    return pl.BlockSpec(memory_space=pltpu.MemorySpace.VMEM)


def ts_transformer_forward(x, pp):
    """x: (B, T, R); pp: packed params (see pack_params). Returns (logits2, logits1, loss)."""
    x2 = x.reshape(BT, R)
    slab = pl.pallas_call(
        _ts_transformer_kernel,
        out_shape=jax.ShapeDtypeStruct((BT, LANE), jnp.float32),
        in_specs=[_vmem_spec() for _ in range(4)],
        out_specs=_vmem_spec(),
    )(x2, pp["wA"], pp["wB"], pp["vecs"])

    logits1 = slab[:, :SEM].reshape(B, T, SEM)
    logits2 = slab[:B, SEM:SEM + CLS].reshape(B, 1, CLS)
    loss = None  # TODO(synk): base TimeSeriesTransformerModel returns no loss without labels
    return logits2, logits1, loss


# ---------------------------------------------------------------------------
# Deterministic parameter init (PyTorch-Linear-style uniform(-1/sqrt(fan_in), .))
# ---------------------------------------------------------------------------
def init_params(key):
    def linear(k, fan_in, fan_out):
        kw, kb = jax.random.split(k)
        bound = 1.0 / float(fan_in) ** 0.5
        w = jax.random.uniform(kw, (fan_in, fan_out), jnp.float32, -bound, bound)
        b = jax.random.uniform(kb, (1, fan_out), jnp.float32, -bound, bound)
        return w, b

    ks = jax.random.split(key, 11)
    p = {}
    p["wq"], p["bq"] = linear(ks[0], R, R)
    p["wk"], p["bk"] = linear(ks[1], R, R)
    p["wv"], p["bv"] = linear(ks[2], R, R)
    p["wo"], p["bo"] = linear(ks[3], R, R)
    p["ffn_w1"], p["ffn_b1"] = linear(ks[4], R, FF)
    p["ffn_w2"], p["ffn_b2"] = linear(ks[5], FF, R)
    p["ln1_g"] = jnp.ones((1, R), jnp.float32)
    p["ln1_b"] = jnp.zeros((1, R), jnp.float32)
    p["ln2_g"] = jnp.ones((1, R), jnp.float32)
    p["ln2_b"] = jnp.zeros((1, R), jnp.float32)
    p["wr1"], p["br1"] = linear(ks[6], R, R)          # regressor Linear(R, R)
    p["wr2"], p["br2"] = linear(ks[7], R, SEM)        # regressor Linear(R, SEM)
    p["wc1"], p["bc1"] = linear(ks[8], R, R)          # classifier Linear(R, R)
    p["wc2"], p["bc2"] = linear(ks[9], R, 1)          # classifier Linear(R, 1)
    p["wc3"], p["bc3"] = linear(ks[10], T, CLS)       # classifier Linear(T, CLS)
    return p


def pack_params(p):
    """One-time offline packing of all parameters into 3 dense slabs."""
    # ---- slab A: lane-concat of every weight whose input dim is R ----
    wA = jnp.concatenate(
        [p["wq"], p["wk"], p["wv"],          # wqkv  (R, 3R)
         p["wo"],                            # wo    (R, R)
         p["ffn_w1"],                        # ffn_w1 (R, FF)
         p["wr1"], p["wc1"]],                # wh1   (R, 2R)
        axis=1)                              # -> (R, 160)
    assert wA.shape == (R, WA_LANES)

    # ---- slab B: sublane-stack of the remaining matrices + constants ----
    w2h = jnp.zeros((2 * R, SEM + 1), jnp.float32)
    w2h = w2h.at[:R, :SEM].set(p["wr2"])
    w2h = w2h.at[R:, SEM:].set(p["wc2"])                              # blockdiag [wr2 0; 0 wc2]
    wc3_rep = jnp.tile(p["wc3"], (B, 1))                              # (BT, CLS)
    sel = (jnp.arange(B)[:, None] == (jnp.arange(BT)[None, :] // T)).astype(jnp.float32)
    row_b = jnp.arange(BT)[:, None] // T
    col_b = jnp.arange(BT)[None, :] // T
    amask = jnp.where(row_b == col_b, 0.0, -1e30).astype(jnp.float32)

    def padw(a, rows):
        return jnp.pad(a, ((0, rows - a.shape[0]), (0, WB_LANES - a.shape[1])))

    wB = jnp.concatenate(
        [padw(p["ffn_w2"], FF),
         padw(w2h, 2 * R),
         padw(wc3_rep, BT),
         padw(sel, 8),
         padw(amask, BT)],
        axis=0)
    assert wB.shape == (WB_ROWS, WB_LANES)

    # ---- slab C: every (1, N) bias / LayerNorm vector, one per sublane row ----
    def padv(a):
        return jnp.pad(a, ((0, 0), (0, VEC_LANES - a.shape[1])))

    bqkv = jnp.concatenate([p["bq"], p["bk"], p["bv"]], axis=1)       # (1, 3R)
    bh1 = jnp.concatenate([p["br1"], p["bc1"]], axis=1)               # (1, 2R)
    b2h = jnp.concatenate([p["br2"], p["bc2"]], axis=1)               # (1, SEM+1)
    rows = [bqkv, p["bo"], p["ln1_g"], p["ln1_b"], p["ffn_b1"], p["ffn_b2"],
            p["ln2_g"], p["ln2_b"], bh1, b2h, p["bc3"]]
    vecs = jnp.concatenate([padv(r) for r in rows], axis=0)           # (11, 64)
    vecs = jnp.pad(vecs, ((0, 16 - vecs.shape[0]), (0, 0)))           # (16, 64)

    return dict(wA=wA, wB=wB, vecs=vecs)


if __name__ == "__main__":
    key = jax.random.PRNGKey(0)
    kx, kp = jax.random.split(key)
    x = jax.random.normal(kx, (B, T, R), jnp.float32)
    params = init_params(kp)
    packed = pack_params(params)

    fwd = jax.jit(ts_transformer_forward)
    logits2, logits1, loss = fwd(x, packed)
    jax.block_until_ready((logits2, logits1))

    assert logits2.shape == (B, 1, CLS)
    assert logits1.shape == (B, T, SEM)
    assert loss is None
    # softmax over the batch axis -> columns of logits2 sum to ~1 across batch
    assert bool(jnp.all(jnp.abs(jnp.sum(logits2, axis=0) - 1.0) < 1e-4))
    assert bool(jnp.all(jnp.isfinite(logits1))) and bool(jnp.all(jnp.isfinite(logits2)))
    print("KERNEL_OK")
</pallas_src>

<mosaic_0001>
module attributes {stable_mosaic.version = 11 : i64} {
  func.func @_ts_transformer_kernel(%arg0: memref<16x16xf32, #tpu.memory_space<vmem>>, %arg1: memref<16x160xf32, #tpu.memory_space<vmem>>, %arg2: memref<136x16xf32, #tpu.memory_space<vmem>>, %arg3: memref<16x64xf32, #tpu.memory_space<vmem>>, %arg4: memref<16x128xf32, #tpu.memory_space<vmem>>) attributes {dimension_semantics = [], scalar_prefetch = 0 : i64, scratch_operands = 0 : i64, tpu.core_type = #tpu.core_type<tc>} {
    %c0 = arith.constant 0 : index
    %c0_0 = arith.constant 0 : index
    %0 = vector.load %arg0[%c0, %c0_0] : memref<16x16xf32, #tpu.memory_space<vmem>>, vector<16x16xf32>
    %c0_1 = arith.constant 0 : index
    %c0_2 = arith.constant 0 : index
    %1 = vector.load %arg1[%c0_1, %c0_2] : memref<16x160xf32, #tpu.memory_space<vmem>>, vector<16x48xf32>
    %c0_3 = arith.constant 0 : index
    %c48 = arith.constant 48 : index
    %2 = vector.load %arg1[%c0_3, %c48] : memref<16x160xf32, #tpu.memory_space<vmem>>, vector<16x16xf32>
    %c0_4 = arith.constant 0 : index
    %c64 = arith.constant 64 : index
    %3 = vector.load %arg1[%c0_4, %c64] : memref<16x160xf32, #tpu.memory_space<vmem>>, vector<16x64xf32>
    %c0_5 = arith.constant 0 : index
    %c128 = arith.constant 128 : index
    %4 = vector.load %arg1[%c0_5, %c128] : memref<16x160xf32, #tpu.memory_space<vmem>>, vector<16x32xf32>
    %c0_6 = arith.constant 0 : index
    %c0_7 = arith.constant 0 : index
    %5 = vector.load %arg2[%c0_6, %c0_7] : memref<136x16xf32, #tpu.memory_space<vmem>>, vector<64x16xf32>
    %c64_8 = arith.constant 64 : index
    %c0_9 = arith.constant 0 : index
    %6 = vector.load %arg2[%c64_8, %c0_9] : memref<136x16xf32, #tpu.memory_space<vmem>>, vector<32x5xf32>
    %c96 = arith.constant 96 : index
    %c0_10 = arith.constant 0 : index
    %7 = vector.load %arg2[%c96, %c0_10] : memref<136x16xf32, #tpu.memory_space<vmem>>, vector<16x3xf32>
    %c112 = arith.constant 112 : index
    %c0_11 = arith.constant 0 : index
    %8 = vector.load %arg2[%c112, %c0_11] : memref<136x16xf32, #tpu.memory_space<vmem>>, vector<2x16xf32>
    %c120 = arith.constant 120 : index
    %c0_12 = arith.constant 0 : index
    %9 = vector.load %arg2[%c120, %c0_12] : memref<136x16xf32, #tpu.memory_space<vmem>>, vector<16x16xf32>
    %c0_13 = arith.constant 0 : index
    %c0_14 = arith.constant 0 : index
    %10 = vector.load %arg3[%c0_13, %c0_14] : memref<16x64xf32, #tpu.memory_space<vmem>>, vector<1x48xf32>
    %c1 = arith.constant 1 : index
    %c0_15 = arith.constant 0 : index
    %11 = vector.load %arg3[%c1, %c0_15] : memref<16x64xf32, #tpu.memory_space<vmem>>, vector<1x16xf32>
    %c2 = arith.constant 2 : index
    %c0_16 = arith.constant 0 : index
    %12 = vector.load %arg3[%c2, %c0_16] : memref<16x64xf32, #tpu.memory_space<vmem>>, vector<1x16xf32>
    %c3 = arith.constant 3 : index
    %c0_17 = arith.constant 0 : index
    %13 = vector.load %arg3[%c3, %c0_17] : memref<16x64xf32, #tpu.memory_space<vmem>>, vector<1x16xf32>
    %c4 = arith.constant 4 : index
    %c0_18 = arith.constant 0 : index
    %14 = vector.load %arg3[%c4, %c0_18] : memref<16x64xf32, #tpu.memory_space<vmem>>, vector<1x64xf32>
    %c5 = arith.constant 5 : index
    %c0_19 = arith.constant 0 : index
    %15 = vector.load %arg3[%c5, %c0_19] : memref<16x64xf32, #tpu.memory_space<vmem>>, vector<1x16xf32>
    %c6 = arith.constant 6 : index
    %c0_20 = arith.constant 0 : index
    %16 = vector.load %arg3[%c6, %c0_20] : memref<16x64xf32, #tpu.memory_space<vmem>>, vector<1x16xf32>
    %c7 = arith.constant 7 : index
    %c0_21 = arith.constant 0 : index
    %17 = vector.load %arg3[%c7, %c0_21] : memref<16x64xf32, #tpu.memory_space<vmem>>, vector<1x16xf32>
    %c8 = arith.constant 8 : index
    %c0_22 = arith.constant 0 : index
    %18 = vector.load %arg3[%c8, %c0_22] : memref<16x64xf32, #tpu.memory_space<vmem>>, vector<1x32xf32>
    %c9 = arith.constant 9 : index
    %c0_23 = arith.constant 0 : index
    %19 = vector.load %arg3[%c9, %c0_23] : memref<16x64xf32, #tpu.memory_space<vmem>>, vector<1x5xf32>
    %c10 = arith.constant 10 : index
    %c0_24 = arith.constant 0 : index
    %20 = vector.load %arg3[%c10, %c0_24] : memref<16x64xf32, #tpu.memory_space<vmem>>, vector<1x3xf32>
    %cst = arith.constant dense<0.000000e+00> : vector<16x48xf32>
    %21 = tpu.matmul %0, %1, %cst {dimension_numbers = #tpu.dot_dimension_numbers<[1], [0], [0], [1], [0, 0, 1, 1], [], []>} : vector<16x16xf32>, vector<16x48xf32>, vector<16x48xf32> -> vector<16x48xf32>
    %22 = vector.broadcast %10 : vector<1x48xf32> to vector<16x48xf32>
    %23 = arith.addf %21, %22 : vector<16x48xf32>
    %24 = vector.extract_strided_slice %23 {offsets = [0, 0], sizes = [16, 16], strides = [1, 1]} : vector<16x48xf32> to vector<16x16xf32>
    %25 = vector.extract_strided_slice %23 {offsets = [0, 16], sizes = [16, 16], strides = [1, 1]} : vector<16x48xf32> to vector<16x16xf32>
    %26 = vector.extract_strided_slice %23 {offsets = [0, 32], sizes = [16, 16], strides = [1, 1]} : vector<16x48xf32> to vector<16x16xf32>
    %cst_25 = arith.constant dense<0.000000e+00> : vector<16x16xf32>
    %27 = tpu.matmul %24, %25, %cst_25 {dimension_numbers = #tpu.dot_dimension_numbers<[1], [1], [0], [0], [0, 0, 1, 0], [], []>} : vector<16x16xf32>, vector<16x16xf32>, vector<16x16xf32> -> vector<16x16xf32>
    %cst_26 = arith.constant 2.500000e-01 : f32
    %28 = vector.broadcast %cst_26 : f32 to vector<16x16xf32>
    %29 = arith.mulf %27, %28 : vector<16x16xf32>
    %30 = arith.addf %29, %9 : vector<16x16xf32>
    %cst_27 = arith.constant dense<0xFF800000> : vector<16xf32>
    %31 = vector.multi_reduction <maximumf>, %30, %cst_27 [1] : vector<16x16xf32> to vector<16xf32>
    %32 = vector.shape_cast %31 : vector<16xf32> to vector<16x1xf32>
    %33 = vector.broadcast %32 : vector<16x1xf32> to vector<16x16xf32>
    %34 = arith.subf %30, %33 : vector<16x16xf32>
    %35 = math.exp %34 : vector<16x16xf32>
    %cst_28 = arith.constant dense<0.000000e+00> : vector<16xf32>
    %36 = vector.multi_reduction <add>, %35, %cst_28 [1] : vector<16x16xf32> to vector<16xf32>
    %37 = vector.shape_cast %36 : vector<16xf32> to vector<16x1xf32>
    %38 = tpu.reciprocal %37 {approx = true} : vector<16x1xf32> -> vector<16x1xf32>
    %39 = vector.broadcast %38 : vector<16x1xf32> to vector<16x16xf32>
    %40 = arith.mulf %35, %39 : vector<16x16xf32>
    %cst_29 = arith.constant dense<0.000000e+00> : vector<16x16xf32>
    %41 = tpu.matmul %40, %26, %cst_29 {dimension_numbers = #tpu.dot_dimension_numbers<[1], [0], [0], [1], [0, 0, 1, 1], [], []>} : vector<16x16xf32>, vector<16x16xf32>, vector<16x16xf32> -> vector<16x16xf32>
    %cst_30 = arith.constant dense<0.000000e+00> : vector<16x16xf32>
    %42 = tpu.matmul %41, %2, %cst_30 {dimension_numbers = #tpu.dot_dimension_numbers<[1], [0], [0], [1], [0, 0, 1, 1], [], []>} : vector<16x16xf32>, vector<16x16xf32>, vector<16x16xf32> -> vector<16x16xf32>
    %43 = arith.addf %0, %42 : vector<16x16xf32>
    %44 = vector.broadcast %11 : vector<1x16xf32> to vector<16x16xf32>
    %45 = arith.addf %43, %44 : vector<16x16xf32>
    %cst_31 = arith.constant dense<0.000000e+00> : vector<16xf32>
    %46 = vector.multi_reduction <add>, %45, %cst_31 [1] : vector<16x16xf32> to vector<16xf32>
    %47 = vector.shape_cast %46 : vector<16xf32> to vector<16x1xf32>
    %cst_32 = arith.constant 1.600000e+01 : f32
    %48 = vector.broadcast %cst_32 : f32 to vector<16x1xf32>
    %49 = arith.divf %47, %48 : vector<16x1xf32>
    %50 = vector.broadcast %49 : vector<16x1xf32> to vector<16x16xf32>
    %51 = arith.subf %45, %50 : vector<16x16xf32>
    %52 = arith.mulf %51, %51 : vector<16x16xf32>
    %cst_33 = arith.constant dense<0.000000e+00> : vector<16xf32>
    %53 = vector.multi_reduction <add>, %52, %cst_33 [1] : vector<16x16xf32> to vector<16xf32>
    %54 = vector.shape_cast %53 : vector<16xf32> to vector<16x1xf32>
    %cst_34 = arith.constant 1.600000e+01 : f32
    %55 = vector.broadcast %cst_34 : f32 to vector<16x1xf32>
    %56 = arith.divf %54, %55 : vector<16x1xf32>
    %57 = vector.broadcast %49 : vector<16x1xf32> to vector<16x16xf32>
    %58 = arith.subf %45, %57 : vector<16x16xf32>
    %cst_35 = arith.constant 9.99999974E-6 : f32
    %59 = vector.broadcast %cst_35 : f32 to vector<16x1xf32>
    %60 = arith.addf %56, %59 : vector<16x1xf32>
    %61 = math.rsqrt %60 : vector<16x1xf32>
    %62 = vector.broadcast %61 : vector<16x1xf32> to vector<16x16xf32>
    %63 = arith.mulf %58, %62 : vector<16x16xf32>
    %64 = vector.broadcast %12 : vector<1x16xf32> to vector<16x16xf32>
    %65 = arith.mulf %63, %64 : vector<16x16xf32>
    %66 = vector.broadcast %13 : vector<1x16xf32> to vector<16x16xf32>
    %67 = arith.addf %65, %66 : vector<16x16xf32>
    %cst_36 = arith.constant dense<0.000000e+00> : vector<16x64xf32>
    %68 = tpu.matmul %67, %3, %cst_36 {dimension_numbers = #tpu.dot_dimension_numbers<[1], [0], [0], [1], [0, 0, 1, 1], [], []>} : vector<16x16xf32>, vector<16x64xf32>, vector<16x64xf32> -> vector<16x64xf32>
    %69 = vector.broadcast %14 : vector<1x64xf32> to vector<16x64xf32>
    %70 = arith.addf %68, %69 : vector<16x64xf32>
    %cst_37 = arith.constant 0.000000e+00 : f32
    %71 = vector.broadcast %cst_37 : f32 to vector<16x64xf32>
    %72 = arith.maximumf %70, %71 : vector<16x64xf32>
    %cst_38 = arith.constant dense<0.000000e+00> : vector<16x16xf32>
    %73 = tpu.matmul %72, %5, %cst_38 {dimension_numbers = #tpu.dot_dimension_numbers<[1], [0], [0], [1], [0, 0, 1, 1], [], []>} : vector<16x64xf32>, vector<64x16xf32>, vector<16x16xf32> -> vector<16x16xf32>
    %74 = vector.broadcast %15 : vector<1x16xf32> to vector<16x16xf32>
    %75 = arith.addf %73, %74 : vector<16x16xf32>
    %76 = arith.addf %67, %75 : vector<16x16xf32>
    %cst_39 = arith.constant dense<0.000000e+00> : vector<16xf32>
    %77 = vector.multi_reduction <add>, %76, %cst_39 [1] : vector<16x16xf32> to vector<16xf32>
    %78 = vector.shape_cast %77 : vector<16xf32> to vector<16x1xf32>
    %cst_40 = arith.constant 1.600000e+01 : f32
    %79 = vector.broadcast %cst_40 : f32 to vector<16x1xf32>
    %80 = arith.divf %78, %79 : vector<16x1xf32>
    %81 = vector.broadcast %80 : vector<16x1xf32> to vector<16x16xf32>
    %82 = arith.subf %76, %81 : vector<16x16xf32>
    %83 = arith.mulf %82, %82 : vector<16x16xf32>
    %cst_41 = arith.constant dense<0.000000e+00> : vector<16xf32>
    %84 = vector.multi_reduction <add>, %83, %cst_41 [1] : vector<16x16xf32> to vector<16xf32>
    %85 = vector.shape_cast %84 : vector<16xf32> to vector<16x1xf32>
    %cst_42 = arith.constant 1.600000e+01 : f32
    %86 = vector.broadcast %cst_42 : f32 to vector<16x1xf32>
    %87 = arith.divf %85, %86 : vector<16x1xf32>
    %88 = vector.broadcast %80 : vector<16x1xf32> to vector<16x16xf32>
    %89 = arith.subf %76, %88 : vector<16x16xf32>
    %cst_43 = arith.constant 9.99999974E-6 : f32
    %90 = vector.broadcast %cst_43 : f32 to vector<16x1xf32>
    %91 = arith.addf %87, %90 : vector<16x1xf32>
    %92 = math.rsqrt %91 : vector<16x1xf32>
    %93 = vector.broadcast %92 : vector<16x1xf32> to vector<16x16xf32>
    %94 = arith.mulf %89, %93 : vector<16x16xf32>
    %95 = vector.broadcast %16 : vector<1x16xf32> to vector<16x16xf32>
    %96 = arith.mulf %94, %95 : vector<16x16xf32>
    %97 = vector.broadcast %17 : vector<1x16xf32> to vector<16x16xf32>
    %98 = arith.addf %96, %97 : vector<16x16xf32>
    %cst_44 = arith.constant dense<0.000000e+00> : vector<16x32xf32>
    %99 = tpu.matmul %98, %4, %cst_44 {dimension_numbers = #tpu.dot_dimension_numbers<[1], [0], [0], [1], [0, 0, 1, 1], [], []>} : vector<16x16xf32>, vector<16x32xf32>, vector<16x32xf32> -> vector<16x32xf32>
    %100 = vector.broadcast %18 : vector<1x32xf32> to vector<16x32xf32>
    %101 = arith.addf %99, %100 : vector<16x32xf32>
    %cst_45 = arith.constant 0.000000e+00 : f32
    %102 = vector.broadcast %cst_45 : f32 to vector<16x32xf32>
    %103 = arith.maximumf %101, %102 : vector<16x32xf32>
    %cst_46 = arith.constant dense<0.000000e+00> : vector<16x5xf32>
    %104 = tpu.matmul %103, %6, %cst_46 {dimension_numbers = #tpu.dot_dimension_numbers<[1], [0], [0], [1], [0, 0, 1, 1], [], []>} : vector<16x32xf32>, vector<32x5xf32>, vector<16x5xf32> -> vector<16x5xf32>
    %105 = vector.broadcast %19 : vector<1x5xf32> to vector<16x5xf32>
    %106 = arith.addf %104, %105 : vector<16x5xf32>
    %107 = vector.extract_strided_slice %106 {offsets = [0, 0], sizes = [16, 4], strides = [1, 1]} : vector<16x5xf32> to vector<16x4xf32>
    %108 = vector.extract_strided_slice %106 {offsets = [0, 4], sizes = [16, 1], strides = [1, 1]} : vector<16x5xf32> to vector<16x1xf32>
    %109 = vector.broadcast %108 : vector<16x1xf32> to vector<16x3xf32>
    %110 = arith.mulf %109, %7 : vector<16x3xf32>
    %cst_47 = arith.constant dense<0.000000e+00> : vector<2x3xf32>
    %111 = tpu.matmul %8, %110, %cst_47 {dimension_numbers = #tpu.dot_dimension_numbers<[1], [0], [0], [1], [0, 0, 1, 1], [], []>} : vector<2x16xf32>, vector<16x3xf32>, vector<2x3xf32> -> vector<2x3xf32>
    %112 = vector.broadcast %20 : vector<1x3xf32> to vector<2x3xf32>
    %113 = arith.addf %111, %112 : vector<2x3xf32>
    %cst_48 = arith.constant dense<0xFF800000> : vector<3xf32>
    %114 = vector.multi_reduction <maximumf>, %113, %cst_48 [0] : vector<2x3xf32> to vector<3xf32>
    %115 = vector.shape_cast %114 : vector<3xf32> to vector<1x3xf32>
    %116 = vector.broadcast %115 : vector<1x3xf32> to vector<2x3xf32>
    %117 = arith.subf %113, %116 : vector<2x3xf32>
    %118 = math.exp %117 : vector<2x3xf32>
    %cst_49 = arith.constant dense<0.000000e+00> : vector<3xf32>
    %119 = vector.multi_reduction <add>, %118, %cst_49 [0] : vector<2x3xf32> to vector<3xf32>
    %120 = vector.shape_cast %119 : vector<3xf32> to vector<1x3xf32>
    %121 = vector.broadcast %120 : vector<1x3xf32> to vector<2x3xf32>
    %122 = arith.divf %118, %121 : vector<2x3xf32>
    %cst_50 = arith.constant 0.000000e+00 : f32
    %123 = vector.broadcast %cst_50 : f32 to vector<16x128xf32>
    %c0_51 = arith.constant 0 : index
    %c0_52 = arith.constant 0 : index
    %124 = vector.load %arg4[%c0_51, %c0_52] : memref<16x128xf32, #tpu.memory_space<vmem>>, vector<16x128xf32>
    tpu.vector_store %arg4[%c0_51, %c0_52], %123 {strides = array<i32>} : memref<16x128xf32, #tpu.memory_space<vmem>>, vector<16x128xf32>,
    %c0_53 = arith.constant 0 : index
    %c0_54 = arith.constant 0 : index
    %125 = vector.load %arg4[%c0_53, %c0_54] : memref<16x128xf32, #tpu.memory_space<vmem>>, vector<16x4xf32>
    tpu.vector_store %arg4[%c0_53, %c0_54], %107 {strides = array<i32>} : memref<16x128xf32, #tpu.memory_space<vmem>>, vector<16x4xf32>,
    %c0_55 = arith.constant 0 : index
    %c4_56 = arith.constant 4 : index
    %126 = vector.load %arg4[%c0_55, %c4_56] : memref<16x128xf32, #tpu.memory_space<vmem>>, vector<2x3xf32>
    tpu.vector_store %arg4[%c0_55, %c4_56], %122 {strides = array<i32>} : memref<16x128xf32, #tpu.memory_space<vmem>>, vector<2x3xf32>,
    return
  }
}

</mosaic_0001>

<llo_original>
// kernel: ts_transformer_forward.1
$region0: #{ts_transformer_forward.1}
  #allocation0 [shape = 'u32[]', space=smem, size = 0x4, offset = 0x4, fixed_abs, tag = 'smem constant byte address 0x4 - core index']
  #allocation1 [shape = 'u32[144,128]{1,0:T(1,128)}', space=vmem, size = 0x12000, scoped, tag = 'internal scratch']
  %s0 = inlined_call_operand.vmem [shape: f32[16,16], index: 0, kind: input, shape index: {}]
  %s1 = inlined_call_operand.vmem [shape: f32[16,160], index: 1, kind: input, shape index: {}]
  %s2 = inlined_call_operand.vmem [shape: f32[136,16], index: 2, kind: input, shape index: {}]
  %s3 = inlined_call_operand.vmem [shape: f32[16,64], index: 3, kind: input, shape index: {}]
  %s4 = inlined_call_operand.vmem [shape: f32[16,128], index: 4, kind: output, shape index: {}]
  %s5 = sld [smem:[#allocation0]]
  $region26: #{ts_transformer_forward.1} parent=0
    _
  %s7 = ssub.s32 1, %s5
  %s8 = scalar_select 0, %s7, %s5
  // Predicated region
  $region2: #{ts_transformer_forward.1} parent=0 // pred_check
    _
  $region3: #{ts_transformer_forward.1} parent=0 // pred_check_branch
    %10 = sbr.rel (0) target = $region5
  $region4: #{ts_transformer_forward.1} parent=0 // pred_region
    _
  $region5: #{ts_transformer_forward.1} parent=0 // pred_fallthru
    _
  // Predicated region
  $region6: #{ts_transformer_forward.1} parent=0 // pred_check
    _
  $region7: #{ts_transformer_forward.1} parent=0 // pred_check_branch
    %12 = sbr.rel (0) target = $region9
  $region8: #{ts_transformer_forward.1} parent=0 // pred_region
    _
  $region9: #{ts_transformer_forward.1} parent=0 // pred_fallthru
    _
  // Predicated region
  $region10: #{ts_transformer_forward.1} parent=0 // pred_check
    _
  $region11: #{ts_transformer_forward.1} parent=0 // pred_check_branch
    %14 = sbr.rel (0) target = $region13
  $region12: #{ts_transformer_forward.1} parent=0 // pred_region
    _
  $region13: #{ts_transformer_forward.1} parent=0 // pred_fallthru
    _
  // Predicated region
  $region14: #{ts_transformer_forward.1} parent=0 // pred_check
    _
  $region15: #{ts_transformer_forward.1} parent=0 // pred_check_branch
    %16 = sbr.rel (0) target = $region17
  $region16: #{ts_transformer_forward.1} parent=0 // pred_region
    _
  $region17: #{ts_transformer_forward.1} parent=0 // pred_fallthru
    _
  %v17 = vld [vmem:[%s0] sm:$0xff]
  %v18 = vld [vmem:[%s0 + $0x8] sm:$0xff]
  %v19 = vld [vmem:[%s1] sm:$0xff]
  %v20 = vld [vmem:[%s1 + $0x10] sm:$0xff]
  %v21 = vld [vmem:[%s1 + $0x8] sm:$0xff]
  %v22 = vld [vmem:[%s1 + $0x18] sm:$0xff]
  %v23 = vld [vmem:[%s2] sm:$0xff]
  %v24 = vld [vmem:[%s2 + $0x8] sm:$0xff]
  %v25 = vld [vmem:[%s2 + $0x10] sm:$0xff]
  %v26 = vld [vmem:[%s2 + $0x18] sm:$0xff]
  %v27 = vld [vmem:[%s2 + $0x20] sm:$0xff]
  %v28 = vld [vmem:[%s2 + $0x28] sm:$0xff]
  %v29 = vld [vmem:[%s2 + $0x30] sm:$0xff]
  %v30 = vld [vmem:[%s2 + $0x38] sm:$0xff]
  %v31 = vld [vmem:[%s2 + $0x40] sm:$0xff]
  %v32 = vld [vmem:[%s2 + $0x48] sm:$0xff]
  %v33 = vld [vmem:[%s2 + $0x50] sm:$0xff]
  %v34 = vld [vmem:[%s2 + $0x58] sm:$0xff]
  %v35 = vld [vmem:[%s2 + $0x60] sm:$0xff]
  %v36 = vld [vmem:[%s2 + $0x68] sm:$0xff]
  %v37 = vld [vmem:[%s2 + $0x70] sm:$0x3]
  %v38 = vld [vmem:[%s2 + $0x78] sm:$0xff]
  %v39 = vld [vmem:[%s2 + $0x80] sm:$0xff]
  %v40 = vld [vmem:[%s3] sm:$0x1]
  %v41 = vld [vmem:[%s3 + $0x1] sm:$0x1]
  %v42 = vld [vmem:[%s3 + $0x2] sm:$0x1]
  %v43 = vld [vmem:[%s3 + $0x3] sm:$0x1]
  %v44 = vld [vmem:[%s3 + $0x4] sm:$0x1]
  %v45 = vld [vmem:[%s3 + $0x5] sm:$0x1]
  %v46 = vld [vmem:[%s3 + $0x6] sm:$0x1]
  %v47 = vld [vmem:[%s3 + $0x7] sm:$0x1]
  %v48 = vld [vmem:[%s3 + $0x8] sm:$0x1]
  %v49 = vld [vmem:[%s3 + $0x9] sm:$0x1]
  %v50 = vld [vmem:[%s3 + $0xa] sm:$0x1]
  %v51 = vlaneseq
  %v52 = vshrl.u32 %v51, 7
  %v53 = vsub.s32 0, %v52
  %v54 = vrot.slane %v40, %v53
  %vm55 = vcmask 130048
  %v57 = vsel %vm55, %v17, 0
  %v60 = vsel %vm55, %v18, 0
  %62 = vmatprep.subr.mxu0 0.0
  %63 = vmatpush1.msra.mxu0 %v19
  %64 = vmatprep.subr.mxu0 0.0
  %65 = vmatpush1.msra.mxu0 %v20
  %66 = vmatprep.subr.mxu0 0.0
  %67 = vmatpush1.msra.mxu0 0.0
  %68 = vmatprep.subr.mxu0 0.0
  %69 = vmatpush1.msra.mxu0 0.0
  %70 = vmatprep.subr.mxu0 0.0
  %71 = vmatpush1.msra.mxu0 0.0
  %72 = vmatprep.subr.mxu0 0.0
  %73 = vmatpush1.msra.mxu0 0.0
  %74 = vmatprep.subr.mxu0 0.0
  %75 = vmatpush1.msra.mxu0 0.0
  %76 = vmatprep.subr.mxu0 0.0
  %77 = vmatpush1.msra.mxu0 0.0
  %78 = vmatprep.subr.mxu0 0.0
  %79 = vmatpush1.msra.mxu0 0.0
  %80 = vmatprep.subr.mxu0 0.0
  %81 = vmatpush1.msra.mxu0 0.0
  %82 = vmatprep.subr.mxu0 0.0
  %83 = vmatpush1.msra.mxu0 0.0
  %84 = vmatprep.subr.mxu0 0.0
  %85 = vmatpush1.msra.mxu0 0.0
  %86 = vmatprep.subr.mxu0 0.0
  %87 = vmatpush1.msra.mxu0 0.0
  %88 = vmatprep.subr.mxu0 0.0
  %89 = vmatpush1.msra.mxu0 0.0
  %90 = vmatprep.subr.mxu0 0.0
  %91 = vmatpush1.msra.mxu0 0.0
  %92 = vmatprep.subr.mxu0 0.0
  %93 = vmatpush1.msra.mxu0 0.0
  %94 = vmatprep.subr.mxu0 0.0
  %95 = vmatpush1.msra.mxu0 0.0
  %96 = vmatprep.subr.mxu0 0.0
  %97 = vmatpush1.msra.mxu0 0.0
  %98 = vmatprep.subr.mxu0 0.0
  %99 = vmatpush1.msra.mxu0 0.0
  %100 = vmatprep.subr.mxu0 0.0
  %101 = vmatpush1.msra.mxu0 0.0
  %102 = vmatprep.subr.mxu0 0.0
  %103 = vmatpush1.msra.mxu0 0.0
  %104 = vmatprep.subr.mxu0 0.0
  %105 = vmatpush1.msra.mxu0 0.0
  %106 = vmatprep.subr.mxu0 0.0
  %107 = vmatpush1.msra.mxu0 0.0
  %108 = vmatprep.subr.mxu0 0.0
  %109 = vmatpush1.msra.mxu0 0.0
  %110 = vmatprep.subr.mxu0 0.0
  %111 = vmatpush1.msra.mxu0 0.0
  %112 = vmatprep.subr.mxu0 0.0
  %113 = vmatpush1.msra.mxu0 0.0
  %114 = vmatprep.subr.mxu0 0.0
  %115 = vmatpush1.msra.mxu0 0.0
  %116 = vmatprep.subr.mxu0 0.0
  %117 = vmatpush1.msra.mxu0 0.0
  %118 = vmatprep.subr.mxu0 0.0
  %119 = vmatpush1.msra.mxu0 0.0
  %120 = vmatprep.subr.mxu0 0.0
  %121 = vmatpush1.msra.mxu0 0.0
  %122 = vmatprep.subr.mxu0 0.0
  %123 = vmatpush1.msra.mxu0 0.0
  %124 = vmatprep.subr.mxu0 0.0
  %125 = vmatpush1.msra.mxu0 0.0
  %126 = vmatprep.mubr.f32.mxu0 0.0
  %127 = vmatmul.mubr.f32.gmra.mrb[0].mxu0 %v57
  %v128 = vpop.f32.mrb[0].mxu0
  %v129 = vadd.f32 %v54, %v128
  %v130 = vpop.f32.mrb[0].mxu0
  %131 = vmatprep.mubr.f32.mxu0 0.0
  %132 = vmatmul.mubr.f32.gmra.mrb[0].mxu0 %v60
  %v133 = vpop.f32.mrb[0].mxu0
  %v134 = vadd.f32 %v54, %v133
  %v135 = vpop.f32.mrb[0].mxu0
  %136 = vdwg.mxu0
  %139 = vrot.lane.b32.xlu0 %v129, 112
  %v140 = vpop.permute.xlu0 %139
  %141 = vrot.lane.b32.xlu0 %v134, 112
  %v142 = vpop.permute.xlu0 %141
  %v143 = vsel %vm55, %v129, 0
  %v145 = vsel %vm55, %v134, 0
  %v147 = vsel %vm55, %v140, 0
  %v149 = vsel %vm55, %v142, 0
  %151 = vmatprep.subr.mxu0 0.0
  %152 = vmatpush1.xpose.msra.mxu0 %v147
  %153 = vmatprep.subr.mxu0 0.0
  %154 = vmatpush1.xpose.msra.mxu0 %v149
  %155 = vmatprep.subr.mxu0 0.0
  %156 = vmatpush1.xpose.msra.mxu0 0.0
  %157 = vmatprep.subr.mxu0 0.0
  %158 = vmatpush1.xpose.msra.mxu0 0.0
  %159 = vmatprep.subr.mxu0 0.0
  %160 = vmatpush1.xpose.msra.mxu0 0.0
  %161 = vmatprep.subr.mxu0 0.0
  %162 = vmatpush1.xpose.msra.mxu0 0.0
  %163 = vmatprep.subr.mxu0 0.0
  %164 = vmatpush1.xpose.msra.mxu0 0.0
  %165 = vmatprep.subr.mxu0 0.0
  %166 = vmatpush1.xpose.msra.mxu0 0.0
  %167 = vmatprep.subr.mxu0 0.0
  %168 = vmatpush1.xpose.msra.mxu0 0.0
  %169 = vmatprep.subr.mxu0 0.0
  %170 = vmatpush1.xpose.msra.mxu0 0.0
  %171 = vmatprep.subr.mxu0 0.0
  %172 = vmatpush1.xpose.msra.mxu0 0.0
  %173 = vmatprep.subr.mxu0 0.0
  %174 = vmatpush1.xpose.msra.mxu0 0.0
  %175 = vmatprep.subr.mxu0 0.0
  %176 = vmatpush1.xpose.msra.mxu0 0.0
  %177 = vmatprep.subr.mxu0 0.0
  %178 = vmatpush1.xpose.msra.mxu0 0.0
  %179 = vmatprep.subr.mxu0 0.0
  %180 = vmatpush1.xpose.msra.mxu0 0.0
  %181 = vmatprep.subr.mxu0 0.0
  %182 = vmatpush1.xpose.msra.mxu0 0.0
  %183 = vmatprep.subr.mxu0 0.0
  %184 = vmatpush1.xpose.msra.mxu0 0.0
  %185 = vmatprep.subr.mxu0 0.0
  %186 = vmatpush1.xpose.msra.mxu0 0.0
  %187 = vmatprep.subr.mxu0 0.0
  %188 = vmatpush1.xpose.msra.mxu0 0.0
  %189 = vmatprep.subr.mxu0 0.0
  %190 = vmatpush1.xpose.msra.mxu0 0.0
  %191 = vmatprep.subr.mxu0 0.0
  %192 = vmatpush1.xpose.msra.mxu0 0.0
  %193 = vmatprep.subr.mxu0 0.0
  %194 = vmatpush1.xpose.msra.mxu0 0.0
  %195 = vmatprep.subr.mxu0 0.0
  %196 = vmatpush1.xpose.msra.mxu0 0.0
  %197 = vmatprep.subr.mxu0 0.0
  %198 = vmatpush1.xpose.msra.mxu0 0.0
  %199 = vmatprep.subr.mxu0 0.0
  %200 = vmatpush1.xpose.msra.mxu0 0.0
  %201 = vmatprep.subr.mxu0 0.0
  %202 = vmatpush1.xpose.msra.mxu0 0.0
  %203 = vmatprep.subr.mxu0 0.0
  %204 = vmatpush1.xpose.msra.mxu0 0.0
  %205 = vmatprep.subr.mxu0 0.0
  %206 = vmatpush1.xpose.msra.mxu0 0.0
  %207 = vmatprep.subr.mxu0 0.0
  %208 = vmatpush1.xpose.msra.mxu0 0.0
  %209 = vmatprep.subr.mxu0 0.0
  %210 = vmatpush1.xpose.msra.mxu0 0.0
  %211 = vmatprep.subr.mxu0 0.0
  %212 = vmatpush1.xpose.msra.mxu0 0.0
  %213 = vmatprep.subr.mxu0 0.0
  %214 = vmatpush1.xpose.msra.mxu0 0.0
  %215 = vmatprep.mubr.f32.mxu0 0.0
  %216 = vmatmul.mubr.f32.gmra.mrb[0].mxu0 %v143
  %v217 = vpop.f32.mrb[0].mxu0
  %v218 = vadd.f32 0.0, %v217
  %v219 = vpop.f32.mrb[0].mxu0
  %220 = vmatprep.mubr.f32.mxu0 0.0
  %221 = vmatmul.mubr.f32.gmra.mrb[0].mxu0 %v145
  %v222 = vpop.f32.mrb[0].mxu0
  %v223 = vadd.f32 0.0, %v222
  %v224 = vpop.f32.mrb[0].mxu0
  %225 = vdwg.mxu0
  %v226 = vmul.f32 %v218, 0.25
  %v227 = vmul.f32 %v223, 0.25
  %v228 = vadd.f32 %v226, %v38
  %v229 = vadd.f32 %v227, %v39
  %v230 = vsel %vm55, %v228, -inf
  %231 = vmax.xlane.f32.xlu0 %v230
  %v232 = vpop.xlane.xlu0 %231
  %v233 = vsel %vm55, %v229, -inf
  %234 = vmax.xlane.f32.xlu0 %v233
  %v235 = vpop.xlane.xlu0 %234
  %v236 = vsub.f32 %v228, %v232
  %v237 = vsub.f32 %v229, %v235
  %v238 = vmul.f32 %v236, 1.442695
  %v239 = vpow.pop %v238
  %v240 = vmul.f32 %v237, 1.442695
  %v241 = vpow.pop %v240
  %v242 = vsel %vm55, %v239, 0.0
  %243 = vadd.xlane.f32.xlu0 %v242
  %v244 = vpop.xlane.xlu0 %243
  %v245 = vsel %vm55, %v241, 0.0
  %246 = vadd.xlane.f32.xlu0 %v245
  %v247 = vpop.xlane.xlu0 %246
  %v248 = vrcp.pop %v244
  %v249 = vrcp.pop %v247
  %v250 = vmul.f32 %v239, %v248
  %v251 = vmul.f32 %v241, %v249
  %252 = vrot.lane.b32.xlu0 %v129, 96
  %v253 = vpop.permute.xlu0 %252
  %254 = vrot.lane.b32.xlu0 %v134, 96
  %v255 = vpop.permute.xlu0 %254
  %v259 = vsel %vm55, %v250, 0
  %v262 = vsel %vm55, %v251, 0
  %264 = vmatprep.subr.mxu0 0.0
  %265 = vmatpush1.msra.mxu0 %v253
  %266 = vmatprep.subr.mxu0 0.0
  %267 = vmatpush1.msra.mxu0 %v255
  %268 = vmatprep.subr.mxu0 0.0
  %269 = vmatpush1.msra.mxu0 0.0
  %270 = vmatprep.subr.mxu0 0.0
  %271 = vmatpush1.msra.mxu0 0.0
  %272 = vmatprep.subr.mxu0 0.0
  %273 = vmatpush1.msra.mxu0 0.0
  %274 = vmatprep.subr.mxu0 0.0
  %275 = vmatpush1.msra.mxu0 0.0
  %276 = vmatprep.subr.mxu0 0.0
  %277 = vmatpush1.msra.mxu0 0.0
  %278 = vmatprep.subr.mxu0 0.0
  %279 = vmatpush1.msra.mxu0 0.0
  %280 = vmatprep.subr.mxu0 0.0
  %281 = vmatpush1.msra.mxu0 0.0
  %282 = vmatprep.subr.mxu0 0.0
  %283 = vmatpush1.msra.mxu0 0.0
  %284 = vmatprep.subr.mxu0 0.0
  %285 = vmatpush1.msra.mxu0 0.0
  %286 = vmatprep.subr.mxu0 0.0
  %287 = vmatpush1.msra.mxu0 0.0
  %288 = vmatprep.subr.mxu0 0.0
  %289 = vmatpush1.msra.mxu0 0.0
  %290 = vmatprep.subr.mxu0 0.0
  %291 = vmatpush1.msra.mxu0 0.0
  %292 = vmatprep.subr.mxu0 0.0
  %293 = vmatpush1.msra.mxu0 0.0
  %294 = vmatprep.subr.mxu0 0.0
  %295 = vmatpush1.msra.mxu0 0.0
  %296 = vmatprep.subr.mxu0 0.0
  %297 = vmatpush1.msra.mxu0 0.0
  %298 = vmatprep.subr.mxu0 0.0
  %299 = vmatpush1.msra.mxu0 0.0
  %300 = vmatprep.subr.mxu0 0.0
  %301 = vmatpush1.msra.mxu0 0.0
  %302 = vmatprep.subr.mxu0 0.0
  %303 = vmatpush1.msra.mxu0 0.0
  %304 = vmatprep.subr.mxu0 0.0
  %305 = vmatpush1.msra.mxu0 0.0
  %306 = vmatprep.subr.mxu0 0.0
  %307 = vmatpush1.msra.mxu0 0.0
  %308 = vmatprep.subr.mxu0 0.0
  %309 = vmatpush1.msra.mxu0 0.0
  %310 = vmatprep.subr.mxu0 0.0
  %311 = vmatpush1.msra.mxu0 0.0
  %312 = vmatprep.subr.mxu0 0.0
  %313 = vmatpush1.msra.mxu0 0.0
  %314 = vmatprep.subr.mxu0 0.0
  %315 = vmatpush1.msra.mxu0 0.0
  %316 = vmatprep.subr.mxu0 0.0
  %317 = vmatpush1.msra.mxu0 0.0
  %318 = vmatprep.subr.mxu0 0.0
  %319 = vmatpush1.msra.mxu0 0.0
  %320 = vmatprep.subr.mxu0 0.0
  %321 = vmatpush1.msra.mxu0 0.0
  %322 = vmatprep.subr.mxu0 0.0
  %323 = vmatpush1.msra.mxu0 0.0
  %324 = vmatprep.subr.mxu0 0.0
  %325 = vmatpush1.msra.mxu0 0.0
  %326 = vmatprep.subr.mxu0 0.0
  %327 = vmatpush1.msra.mxu0 0.0
  %328 = vmatprep.mubr.f32.mxu0 0.0
  %329 = vmatmul.mubr.f32.gmra.mrb[0].mxu0 %v259
  %v330 = vpop.f32.mrb[0].mxu0
  %v331 = vadd.f32 0.0, %v330
  %v332 = vpop.f32.mrb[0].mxu0
  %333 = vmatprep.mubr.f32.mxu0 0.0
  %334 = vmatmul.mubr.f32.gmra.mrb[0].mxu0 %v262
  %v335 = vpop.f32.mrb[0].mxu0
  %v336 = vadd.f32 0.0, %v335
  %v337 = vpop.f32.mrb[0].mxu0
  %338 = vdwg.mxu0
  %341 = vrot.lane.b32.xlu0 %v19, 80
  %v342 = vpop.permute.xlu0 %341
  %343 = vrot.lane.b32.xlu0 %v20, 80
  %v344 = vpop.permute.xlu0 %343
  %v348 = vsel %vm55, %v331, 0
  %v351 = vsel %vm55, %v336, 0
  %353 = vmatprep.subr.mxu0 0.0
  %354 = vmatpush1.msra.mxu0 %v342
  %355 = vmatprep.subr.mxu0 0.0
  %356 = vmatpush1.msra.mxu0 %v344
  %357 = vmatprep.subr.mxu0 0.0
  %358 = vmatpush1.msra.mxu0 0.0
  %359 = vmatprep.subr.mxu0 0.0
  %360 = vmatpush1.msra.mxu0 0.0
  %361 = vmatprep.subr.mxu0 0.0
  %362 = vmatpush1.msra.mxu0 0.0
  %363 = vmatprep.subr.mxu0 0.0
  %364 = vmatpush1.msra.mxu0 0.0
  %365 = vmatprep.subr.mxu0 0.0
  %366 = vmatpush1.msra.mxu0 0.0
  %367 = vmatprep.subr.mxu0 0.0
  %368 = vmatpush1.msra.mxu0 0.0
  %369 = vmatprep.subr.mxu0 0.0
  %370 = vmatpush1.msra.mxu0 0.0
  %371 = vmatprep.subr.mxu0 0.0
  %372 = vmatpush1.msra.mxu0 0.0
  %373 = vmatprep.subr.mxu0 0.0
  %374 = vmatpush1.msra.mxu0 0.0
  %375 = vmatprep.subr.mxu0 0.0
  %376 = vmatpush1.msra.mxu0 0.0
  %377 = vmatprep.subr.mxu0 0.0
  %378 = vmatpush1.msra.mxu0 0.0
  %379 = vmatprep.subr.mxu0 0.0
  %380 = vmatpush1.msra.mxu0 0.0
  %381 = vmatprep.subr.mxu0 0.0
  %382 = vmatpush1.msra.mxu0 0.0
  %383 = vmatprep.subr.mxu0 0.0
  %384 = vmatpush1.msra.mxu0 0.0
  %385 = vmatprep.subr.mxu0 0.0
  %386 = vmatpush1.msra.mxu0 0.0
  %387 = vmatprep.subr.mxu0 0.0
  %388 = vmatpush1.msra.mxu0 0.0
  %389 = vmatprep.subr.mxu0 0.0
  %390 = vmatpush1.msra.mxu0 0.0
  %391 = vmatprep.subr.mxu0 0.0
  %392 = vmatpush1.msra.mxu0 0.0
  %393 = vmatprep.subr.mxu0 0.0
  %394 = vmatpush1.msra.mxu0 0.0
  %395 = vmatprep.subr.mxu0 0.0
  %396 = vmatpush1.msra.mxu0 0.0
  %397 = vmatprep.subr.mxu0 0.0
  %398 = vmatpush1.msra.mxu0 0.0
  %399 = vmatprep.subr.mxu0 0.0
  %400 = vmatpush1.msra.mxu0 0.0
  %401 = vmatprep.subr.mxu0 0.0
  %402 = vmatpush1.msra.mxu0 0.0
  %403 = vmatprep.subr.mxu0 0.0
  %404 = vmatpush1.msra.mxu0 0.0
  %405 = vmatprep.subr.mxu0 0.0
  %406 = vmatpush1.msra.mxu0 0.0
  %407 = vmatprep.subr.mxu0 0.0
  %408 = vmatpush1.msra.mxu0 0.0
  %409 = vmatprep.subr.mxu0 0.0
  %410 = vmatpush1.msra.mxu0 0.0
  %411 = vmatprep.subr.mxu0 0.0
  %412 = vmatpush1.msra.mxu0 0.0
  %413 = vmatprep.subr.mxu0 0.0
  %414 = vmatpush1.msra.mxu0 0.0
  %415 = vmatprep.subr.mxu0 0.0
  %416 = vmatpush1.msra.mxu0 0.0
  %417 = vmatprep.mubr.f32.mxu0 0.0
  %418 = vmatmul.mubr.f32.gmra.mrb[0].mxu0 %v348
  %v419 = vpop.f32.mrb[0].mxu0
  %v420 = vadd.f32 0.0, %v419
  %v421 = vpop.f32.mrb[0].mxu0
  %422 = vmatprep.mubr.f32.mxu0 0.0
  %423 = vmatmul.mubr.f32.gmra.mrb[0].mxu0 %v351
  %v424 = vpop.f32.mrb[0].mxu0
  %v425 = vadd.f32 0.0, %v424
  %v426 = vpop.f32.mrb[0].mxu0
  %427 = vdwg.mxu0
  %v428 = vadd.f32 %v17, %v420
  %v429 = vadd.f32 %v18, %v425
  %v430 = vlaneseq
  %v431 = vshrl.u32 %v430, 7
  %v432 = vsub.s32 0, %v431
  %v433 = vrot.slane %v41, %v432
  %v434 = vadd.f32 %v428, %v433
  %v435 = vadd.f32 %v429, %v433
  %v436 = vsel %vm55, %v434, 0.0
  %437 = vadd.xlane.f32.xlu0 %v436
  %v438 = vpop.xlane.xlu0 %437
  %v439 = vsel %vm55, %v435, 0.0
  %440 = vadd.xlane.f32.xlu0 %v439
  %v441 = vpop.xlane.xlu0 %440
  %v442 = vrcp.pop 16.0
  %v443 = vmul.f32 %v438, %v442
  %v444 = vmul.f32 %v441, %v442
  %v445 = vsub.f32 %v434, %v443
  %v446 = vsub.f32 %v435, %v444
  %v447 = vmul.f32 %v445, %v445
  %v448 = vmul.f32 %v446, %v446
  %v449 = vsel %vm55, %v447, 0.0
  %450 = vadd.xlane.f32.xlu0 %v449
  %v451 = vpop.xlane.xlu0 %450
  %v452 = vsel %vm55, %v448, 0.0
  %453 = vadd.xlane.f32.xlu0 %v452
  %v454 = vpop.xlane.xlu0 %453
  %v455 = vmul.f32 %v451, %v442
  %v456 = vmul.f32 %v454, %v442
  %v457 = vadd.f32 %v455, 1e-05
  %v458 = vadd.f32 %v456, 1e-05
  %v459 = vrsqrt.pop %v457
  %v460 = vrsqrt.pop %v458
  %v461 = vmul.f32 %v445, %v459
  %v462 = vmul.f32 %v446, %v460
  %v463 = vlaneseq
  %v464 = vshrl.u32 %v463, 7
  %v465 = vsub.s32 0, %v464
  %v466 = vrot.slane %v42, %v465
  %v467 = vmul.f32 %v461, %v466
  %v468 = vmul.f32 %v462, %v466
  %v469 = vlaneseq
  %v470 = vshrl.u32 %v469, 7
  %v471 = vsub.s32 0, %v470
  %v472 = vrot.slane %v43, %v471
  %v473 = vadd.f32 %v467, %v472
  %v474 = vadd.f32 %v468, %v472
  %v475 = vlaneseq
  %v476 = vshrl.u32 %v475, 7
  %v477 = vsub.s32 0, %v476
  %v478 = vrot.slane %v44, %v477
  %479 = vrot.lane.b32.xlu0 %v19, 64
  %v480 = vpop.permute.xlu0 %479
  %481 = vrot.lane.b32.xlu0 %v20, 64
  %v482 = vpop.permute.xlu0 %481
  %v486 = vsel %vm55, %v473, 0
  %v489 = vsel %vm55, %v474, 0
  %491 = vmatprep.subr.mxu0 0.0
  %492 = vmatpush1.msra.mxu0 %v480
  %493 = vmatprep.subr.mxu0 0.0
  %494 = vmatpush1.msra.mxu0 %v482
  %495 = vmatprep.subr.mxu0 0.0
  %496 = vmatpush1.msra.mxu0 0.0
  %497 = vmatprep.subr.mxu0 0.0
  %498 = vmatpush1.msra.mxu0 0.0
  %499 = vmatprep.subr.mxu0 0.0
  %500 = vmatpush1.msra.mxu0 0.0
  %501 = vmatprep.subr.mxu0 0.0
  %502 = vmatpush1.msra.mxu0 0.0
  %503 = vmatprep.subr.mxu0 0.0
  %504 = vmatpush1.msra.mxu0 0.0
  %505 = vmatprep.subr.mxu0 0.0
  %506 = vmatpush1.msra.mxu0 0.0
  %507 = vmatprep.subr.mxu0 0.0
  %508 = vmatpush1.msra.mxu0 0.0
  %509 = vmatprep.subr.mxu0 0.0
  %510 = vmatpush1.msra.mxu0 0.0
  %511 = vmatprep.subr.mxu0 0.0
  %512 = vmatpush1.msra.mxu0 0.0
  %513 = vmatprep.subr.mxu0 0.0
  %514 = vmatpush1.msra.mxu0 0.0
  %515 = vmatprep.subr.mxu0 0.0
  %516 = vmatpush1.msra.mxu0 0.0
  %517 = vmatprep.subr.mxu0 0.0
  %518 = vmatpush1.msra.mxu0 0.0
  %519 = vmatprep.subr.mxu0 0.0
  %520 = vmatpush1.msra.mxu0 0.0
  %521 = vmatprep.subr.mxu0 0.0
  %522 = vmatpush1.msra.mxu0 0.0
  %523 = vmatprep.subr.mxu0 0.0
  %524 = vmatpush1.msra.mxu0 0.0
  %525 = vmatprep.subr.mxu0 0.0
  %526 = vmatpush1.msra.mxu0 0.0
  %527 = vmatprep.subr.mxu0 0.0
  %528 = vmatpush1.msra.mxu0 0.0
  %529 = vmatprep.subr.mxu0 0.0
  %530 = vmatpush1.msra.mxu0 0.0
  %531 = vmatprep.subr.mxu0 0.0
  %532 = vmatpush1.msra.mxu0 0.0
  %533 = vmatprep.subr.mxu0 0.0
  %534 = vmatpush1.msra.mxu0 0.0
  %535 = vmatprep.subr.mxu0 0.0
  %536 = vmatpush1.msra.mxu0 0.0
  %537 = vmatprep.subr.mxu0 0.0
  %538 = vmatpush1.msra.mxu0 0.0
  %539 = vmatprep.subr.mxu0 0.0
  %540 = vmatpush1.msra.mxu0 0.0
  %541 = vmatprep.subr.mxu0 0.0
  %542 = vmatpush1.msra.mxu0 0.0
  %543 = vmatprep.subr.mxu0 0.0
  %544 = vmatpush1.msra.mxu0 0.0
  %545 = vmatprep.subr.mxu0 0.0
  %546 = vmatpush1.msra.mxu0 0.0
  %547 = vmatprep.subr.mxu0 0.0
  %548 = vmatpush1.msra.mxu0 0.0
  %549 = vmatprep.subr.mxu0 0.0
  %550 = vmatpush1.msra.mxu0 0.0
  %551 = vmatprep.subr.mxu0 0.0
  %552 = vmatpush1.msra.mxu0 0.0
  %553 = vmatprep.subr.mxu0 0.0
  %554 = vmatpush1.msra.mxu0 0.0
  %555 = vmatprep.mubr.f32.mxu0 0.0
  %556 = vmatmul.mubr.f32.gmra.mrb[0].mxu0 %v486
  %v557 = vpop.f32.mrb[0].mxu0
  %v558 = vadd.f32 %v478, %v557
  %v559 = vpop.f32.mrb[0].mxu0
  %560 = vmatprep.mubr.f32.mxu0 0.0
  %561 = vmatmul.mubr.f32.gmra.mrb[0].mxu0 %v489
  %v562 = vpop.f32.mrb[0].mxu0
  %v563 = vadd.f32 %v478, %v562
  %v564 = vpop.f32.mrb[0].mxu0
  %565 = vdwg.mxu0
  %v566 = vmax.f32 %v558, 0.0
  %v567 = vmax.f32 %v563, 0.0
  %v568 = vlaneseq
  %v569 = vshrl.u32 %v568, 7
  %v570 = vsub.s32 0, %v569
  %v571 = vrot.slane %v45, %v570
  %vm572 = vcmask 523264
  %v574 = vsel %vm572, %v566, 0
  %v577 = vsel %vm572, %v567, 0
  %579 = vmatprep.subr.mxu0 0.0
  %580 = vmatpush1.msra.mxu0 %v23
  %581 = vmatprep.subr.mxu0 0.0
  %582 = vmatpush1.msra.mxu0 %v24
  %583 = vmatprep.subr.mxu0 0.0
  %584 = vmatpush1.msra.mxu0 %v25
  %585 = vmatprep.subr.mxu0 0.0
  %586 = vmatpush1.msra.mxu0 %v26
  %587 = vmatprep.subr.mxu0 0.0
  %588 = vmatpush1.msra.mxu0 %v27
  %589 = vmatprep.subr.mxu0 0.0
  %590 = vmatpush1.msra.mxu0 %v28
  %591 = vmatprep.subr.mxu0 0.0
  %592 = vmatpush1.msra.mxu0 %v29
  %593 = vmatprep.subr.mxu0 0.0
  %594 = vmatpush1.msra.mxu0 %v30
  %595 = vmatprep.subr.mxu0 0.0
  %596 = vmatpush1.msra.mxu0 0.0
  %597 = vmatprep.subr.mxu0 0.0
  %598 = vmatpush1.msra.mxu0 0.0
  %599 = vmatprep.subr.mxu0 0.0
  %600 = vmatpush1.msra.mxu0 0.0
  %601 = vmatprep.subr.mxu0 0.0
  %602 = vmatpush1.msra.mxu0 0.0
  %603 = vmatprep.subr.mxu0 0.0
  %604 = vmatpush1.msra.mxu0 0.0
  %605 = vmatprep.subr.mxu0 0.0
  %606 = vmatpush1.msra.mxu0 0.0
  %607 = vmatprep.subr.mxu0 0.0
  %608 = vmatpush1.msra.mxu0 0.0
  %609 = vmatprep.subr.mxu0 0.0
  %610 = vmatpush1.msra.mxu0 0.0
  %611 = vmatprep.subr.mxu0 0.0
  %612 = vmatpush1.msra.mxu0 0.0
  %613 = vmatprep.subr.mxu0 0.0
  %614 = vmatpush1.msra.mxu0 0.0
  %615 = vmatprep.subr.mxu0 0.0
  %616 = vmatpush1.msra.mxu0 0.0
  %617 = vmatprep.subr.mxu0 0.0
  %618 = vmatpush1.msra.mxu0 0.0
  %619 = vmatprep.subr.mxu0 0.0
  %620 = vmatpush1.msra.mxu0 0.0
  %621 = vmatprep.subr.mxu0 0.0
  %622 = vmatpush1.msra.mxu0 0.0
  %623 = vmatprep.subr.mxu0 0.0
  %624 = vmatpush1.msra.mxu0 0.0
  %625 = vmatprep.subr.mxu0 0.0
  %626 = vmatpush1.msra.mxu0 0.0
  %627 = vmatprep.subr.mxu0 0.0
  %628 = vmatpush1.msra.mxu0 0.0
  %629 = vmatprep.subr.mxu0 0.0
  %630 = vmatpush1.msra.mxu0 0.0
  %631 = vmatprep.subr.mxu0 0.0
  %632 = vmatpush1.msra.mxu0 0.0
  %633 = vmatprep.subr.mxu0 0.0
  %634 = vmatpush1.msra.mxu0 0.0
  %635 = vmatprep.subr.mxu0 0.0
  %636 = vmatpush1.msra.mxu0 0.0
  %637 = vmatprep.subr.mxu0 0.0
  %638 = vmatpush1.msra.mxu0 0.0
  %639 = vmatprep.subr.mxu0 0.0
  %640 = vmatpush1.msra.mxu0 0.0
  %641 = vmatprep.subr.mxu0 0.0
  %642 = vmatpush1.msra.mxu0 0.0
  %643 = vmatprep.mubr.f32.mxu0 0.0
  %644 = vmatmul.mubr.f32.gmra.mrb[0].mxu0 %v574
  %v645 = vpop.f32.mrb[0].mxu0
  %v646 = vadd.f32 %v571, %v645
  %v647 = vpop.f32.mrb[0].mxu0
  %648 = vmatprep.mubr.f32.mxu0 0.0
  %649 = vmatmul.mubr.f32.gmra.mrb[0].mxu0 %v577
  %v650 = vpop.f32.mrb[0].mxu0
  %v651 = vadd.f32 %v571, %v650
  %v652 = vpop.f32.mrb[0].mxu0
  %653 = vdwg.mxu0
  %v654 = vadd.f32 %v473, %v646
  %v655 = vadd.f32 %v474, %v651
  %v656 = vsel %vm55, %v654, 0.0
  %657 = vadd.xlane.f32.xlu0 %v656
  %v658 = vpop.xlane.xlu0 %657
  %v659 = vsel %vm55, %v655, 0.0
  %660 = vadd.xlane.f32.xlu0 %v659
  %v661 = vpop.xlane.xlu0 %660
  %v662 = vmul.f32 %v658, %v442
  %v663 = vmul.f32 %v661, %v442
  %v664 = vsub.f32 %v654, %v662
  %v665 = vsub.f32 %v655, %v663
  %v666 = vmul.f32 %v664, %v664
  %v667 = vmul.f32 %v665, %v665
  %v668 = vsel %vm55, %v666, 0.0
  %669 = vadd.xlane.f32.xlu0 %v668
  %v670 = vpop.xlane.xlu0 %669
  %v671 = vsel %vm55, %v667, 0.0
  %672 = vadd.xlane.f32.xlu0 %v671
  %v673 = vpop.xlane.xlu0 %672
  %v674 = vmul.f32 %v670, %v442
  %v675 = vmul.f32 %v673, %v442
  %v676 = vadd.f32 %v674, 1e-05
  %v677 = vadd.f32 %v675, 1e-05
  %v678 = vrsqrt.pop %v676
  %v679 = vrsqrt.pop %v677
  %v680 = vmul.f32 %v664, %v678
  %v681 = vmul.f32 %v665, %v679
  %v682 = vlaneseq
  %v683 = vshrl.u32 %v682, 7
  %v684 = vsub.s32 0, %v683
  %v685 = vrot.slane %v46, %v684
  %v686 = vmul.f32 %v680, %v685
  %v687 = vmul.f32 %v681, %v685
  %v688 = vlaneseq
  %v689 = vshrl.u32 %v688, 7
  %v690 = vsub.s32 0, %v689
  %v691 = vrot.slane %v47, %v690
  %v692 = vadd.f32 %v686, %v691
  %v693 = vadd.f32 %v687, %v691
  %v694 = vlaneseq
  %v695 = vshrl.u32 %v694, 7
  %v696 = vsub.s32 0, %v695
  %v697 = vrot.slane %v48, %v696
  %v699 = vsel %vm55, %v692, 0
  %v702 = vsel %vm55, %v693, 0
  %704 = vmatprep.subr.mxu0 0.0
  %705 = vmatpush1.msra.mxu0 %v21
  %706 = vmatprep.subr.mxu0 0.0
  %707 = vmatpush1.msra.mxu0 %v22
  %708 = vmatprep.subr.mxu0 0.0
  %709 = vmatpush1.msra.mxu0 0.0
  %710 = vmatprep.subr.mxu0 0.0
  %711 = vmatpush1.msra.mxu0 0.0
  %712 = vmatprep.subr.mxu0 0.0
  %713 = vmatpush1.msra.mxu0 0.0
  %714 = vmatprep.subr.mxu0 0.0
  %715 = vmatpush1.msra.mxu0 0.0
  %716 = vmatprep.subr.mxu0 0.0
  %717 = vmatpush1.msra.mxu0 0.0
  %718 = vmatprep.subr.mxu0 0.0
  %719 = vmatpush1.msra.mxu0 0.0
  %720 = vmatprep.subr.mxu0 0.0
  %721 = vmatpush1.msra.mxu0 0.0
  %722 = vmatprep.subr.mxu0 0.0
  %723 = vmatpush1.msra.mxu0 0.0
  %724 = vmatprep.subr.mxu0 0.0
  %725 = vmatpush1.msra.mxu0 0.0
  %726 = vmatprep.subr.mxu0 0.0
  %727 = vmatpush1.msra.mxu0 0.0
  %728 = vmatprep.subr.mxu0 0.0
  %729 = vmatpush1.msra.mxu0 0.0
  %730 = vmatprep.subr.mxu0 0.0
  %731 = vmatpush1.msra.mxu0 0.0
  %732 = vmatprep.subr.mxu0 0.0
  %733 = vmatpush1.msra.mxu0 0.0
  %734 = vmatprep.subr.mxu0 0.0
  %735 = vmatpush1.msra.mxu0 0.0
  %736 = vmatprep.subr.mxu0 0.0
  %737 = vmatpush1.msra.mxu0 0.0
  %738 = vmatprep.subr.mxu0 0.0
  %739 = vmatpush1.msra.mxu0 0.0
  %740 = vmatprep.subr.mxu0 0.0
  %741 = vmatpush1.msra.mxu0 0.0
  %742 = vmatprep.subr.mxu0 0.0
  %743 = vmatpush1.msra.mxu0 0.0
  %744 = vmatprep.subr.mxu0 0.0
  %745 = vmatpush1.msra.mxu0 0.0
  %746 = vmatprep.subr.mxu0 0.0
  %747 = vmatpush1.msra.mxu0 0.0
  %748 = vmatprep.subr.mxu0 0.0
  %749 = vmatpush1.msra.mxu0 0.0
  %750 = vmatprep.subr.mxu0 0.0
  %751 = vmatpush1.msra.mxu0 0.0
  %752 = vmatprep.subr.mxu0 0.0
  %753 = vmatpush1.msra.mxu0 0.0
  %754 = vmatprep.subr.mxu0 0.0
  %755 = vmatpush1.msra.mxu0 0.0
  %756 = vmatprep.subr.mxu0 0.0
  %757 = vmatpush1.msra.mxu0 0.0
  %758 = vmatprep.subr.mxu0 0.0
  %759 = vmatpush1.msra.mxu0 0.0
  %760 = vmatprep.subr.mxu0 0.0
  %761 = vmatpush1.msra.mxu0 0.0
  %762 = vmatprep.subr.mxu0 0.0
  %763 = vmatpush1.msra.mxu0 0.0
  %764 = vmatprep.subr.mxu0 0.0
  %765 = vmatpush1.msra.mxu0 0.0
  %766 = vmatprep.subr.mxu0 0.0
  %767 = vmatpush1.msra.mxu0 0.0
  %768 = vmatprep.mubr.f32.mxu0 0.0
  %769 = vmatmul.mubr.f32.gmra.mrb[0].mxu0 %v699
  %v770 = vpop.f32.mrb[0].mxu0
  %v771 = vadd.f32 %v697, %v770
  %v772 = vpop.f32.mrb[0].mxu0
  %773 = vmatprep.mubr.f32.mxu0 0.0
  %774 = vmatmul.mubr.f32.gmra.mrb[0].mxu0 %v702
  %v775 = vpop.f32.mrb[0].mxu0
  %v776 = vadd.f32 %v697, %v775
  %v777 = vpop.f32.mrb[0].mxu0
  %778 = vdwg.mxu0
  %v779 = vmax.f32 %v771, 0.0
  %v780 = vmax.f32 %v776, 0.0
  %v781 = vlaneseq
  %v782 = vshrl.u32 %v781, 7
  %v783 = vsub.s32 0, %v782
  %v784 = vrot.slane %v49, %v783
  %vm785 = vcmask 261120
  %v787 = vsel %vm785, %v779, 0
  %v790 = vsel %vm785, %v780, 0
  %792 = vmatprep.subr.mxu0 0.0
  %793 = vmatpush1.msra.mxu0 %v31
  %794 = vmatprep.subr.mxu0 0.0
  %795 = vmatpush1.msra.mxu0 %v32
  %796 = vmatprep.subr.mxu0 0.0
  %797 = vmatpush1.msra.mxu0 %v33
  %798 = vmatprep.subr.mxu0 0.0
  %799 = vmatpush1.msra.mxu0 %v34
  %800 = vmatprep.subr.mxu0 0.0
  %801 = vmatpush1.msra.mxu0 0.0
  %802 = vmatprep.subr.mxu0 0.0
  %803 = vmatpush1.msra.mxu0 0.0
  %804 = vmatprep.subr.mxu0 0.0
  %805 = vmatpush1.msra.mxu0 0.0
  %806 = vmatprep.subr.mxu0 0.0
  %807 = vmatpush1.msra.mxu0 0.0
  %808 = vmatprep.subr.mxu0 0.0
  %809 = vmatpush1.msra.mxu0 0.0
  %810 = vmatprep.subr.mxu0 0.0
  %811 = vmatpush1.msra.mxu0 0.0
  %812 = vmatprep.subr.mxu0 0.0
  %813 = vmatpush1.msra.mxu0 0.0
  %814 = vmatprep.subr.mxu0 0.0
  %815 = vmatpush1.msra.mxu0 0.0
  %816 = vmatprep.subr.mxu0 0.0
  %817 = vmatpush1.msra.mxu0 0.0
  %818 = vmatprep.subr.mxu0 0.0
  %819 = vmatpush1.msra.mxu0 0.0
  %820 = vmatprep.subr.mxu0 0.0
  %821 = vmatpush1.msra.mxu0 0.0
  %822 = vmatprep.subr.mxu0 0.0
  %823 = vmatpush1.msra.mxu0 0.0
  %824 = vmatprep.subr.mxu0 0.0
  %825 = vmatpush1.msra.mxu0 0.0
  %826 = vmatprep.subr.mxu0 0.0
  %827 = vmatpush1.msra.mxu0 0.0
  %828 = vmatprep.subr.mxu0 0.0
  %829 = vmatpush1.msra.mxu0 0.0
  %830 = vmatprep.subr.mxu0 0.0
  %831 = vmatpush1.msra.mxu0 0.0
  %832 = vmatprep.subr.mxu0 0.0
  %833 = vmatpush1.msra.mxu0 0.0
  %834 = vmatprep.subr.mxu0 0.0
  %835 = vmatpush1.msra.mxu0 0.0
  %836 = vmatprep.subr.mxu0 0.0
  %837 = vmatpush1.msra.mxu0 0.0
  %838 = vmatprep.subr.mxu0 0.0
  %839 = vmatpush1.msra.mxu0 0.0
  %840 = vmatprep.subr.mxu0 0.0
  %841 = vmatpush1.msra.mxu0 0.0
  %842 = vmatprep.subr.mxu0 0.0
  %843 = vmatpush1.msra.mxu0 0.0
  %844 = vmatprep.subr.mxu0 0.0
  %845 = vmatpush1.msra.mxu0 0.0
  %846 = vmatprep.subr.mxu0 0.0
  %847 = vmatpush1.msra.mxu0 0.0
  %848 = vmatprep.subr.mxu0 0.0
  %849 = vmatpush1.msra.mxu0 0.0
  %850 = vmatprep.subr.mxu0 0.0
  %851 = vmatpush1.msra.mxu0 0.0
  %852 = vmatprep.subr.mxu0 0.0
  %853 = vmatpush1.msra.mxu0 0.0
  %854 = vmatprep.subr.mxu0 0.0
  %855 = vmatpush1.msra.mxu0 0.0
  %856 = vmatprep.mubr.f32.mxu0 0.0
  %857 = vmatmul.mubr.f32.gmra.mrb[0].mxu0 %v787
  %v858 = vpop.f32.mrb[0].mxu0
  %v859 = vadd.f32 %v784, %v858
  %v860 = vpop.f32.mrb[0].mxu0
  %861 = vmatprep.mubr.f32.mxu0 0.0
  %862 = vmatmul.mubr.f32.gmra.mrb[0].mxu0 %v790
  %v863 = vpop.f32.mrb[0].mxu0
  %v864 = vadd.f32 %v784, %v863
  %v865 = vpop.f32.mrb[0].mxu0
  %866 = vdwg.mxu0
  %868 = vset.pattern.permute.xlu0 4
  %869 = vperm.xlu0 %868, %v859
  %v870 = vpop.permute.xlu0 %869
  %873 = vset.pattern.permute.xlu0 4
  %874 = vperm.xlu0 %873, %v864
  %v875 = vpop.permute.xlu0 %874
  %v877 = vmul.f32 %v870, %v35
  %v878 = vmul.f32 %v875, %v36
  %v879 = vlaneseq
  %v880 = vshrl.u32 %v879, 7
  %v881 = vsub.s32 0, %v880
  %v882 = vrot.slane %v50, %v881
  %v884 = vsel %vm55, %v37, 0
  %886 = vmatprep.subr.mxu0 0.0
  %887 = vmatpush1.msra.mxu0 %v877
  %888 = vmatprep.subr.mxu0 0.0
  %889 = vmatpush1.msra.mxu0 %v878
  %890 = vmatprep.subr.mxu0 0.0
  %891 = vmatpush1.msra.mxu0 0.0
  %892 = vmatprep.subr.mxu0 0.0
  %893 = vmatpush1.msra.mxu0 0.0
  %894 = vmatprep.subr.mxu0 0.0
  %895 = vmatpush1.msra.mxu0 0.0
  %896 = vmatprep.subr.mxu0 0.0
  %897 = vmatpush1.msra.mxu0 0.0
  %898 = vmatprep.subr.mxu0 0.0
  %899 = vmatpush1.msra.mxu0 0.0
  %900 = vmatprep.subr.mxu0 0.0
  %901 = vmatpush1.msra.mxu0 0.0
  %902 = vmatprep.subr.mxu0 0.0
  %903 = vmatpush1.msra.mxu0 0.0
  %904 = vmatprep.subr.mxu0 0.0
  %905 = vmatpush1.msra.mxu0 0.0
  %906 = vmatprep.subr.mxu0 0.0
  %907 = vmatpush1.msra.mxu0 0.0
  %908 = vmatprep.subr.mxu0 0.0
  %909 = vmatpush1.msra.mxu0 0.0
  %910 = vmatprep.subr.mxu0 0.0
  %911 = vmatpush1.msra.mxu0 0.0
  %912 = vmatprep.subr.mxu0 0.0
  %913 = vmatpush1.msra.mxu0 0.0
  %914 = vmatprep.subr.mxu0 0.0
  %915 = vmatpush1.msra.mxu0 0.0
  %916 = vmatprep.subr.mxu0 0.0
  %917 = vmatpush1.msra.mxu0 0.0
  %918 = vmatprep.subr.mxu0 0.0
  %919 = vmatpush1.msra.mxu0 0.0
  %920 = vmatprep.subr.mxu0 0.0
  %921 = vmatpush1.msra.mxu0 0.0
  %922 = vmatprep.subr.mxu0 0.0
  %923 = vmatpush1.msra.mxu0 0.0
  %924 = vmatprep.subr.mxu0 0.0
  %925 = vmatpush1.msra.mxu0 0.0
  %926 = vmatprep.subr.mxu0 0.0
  %927 = vmatpush1.msra.mxu0 0.0
  %928 = vmatprep.subr.mxu0 0.0
  %929 = vmatpush1.msra.mxu0 0.0
  %930 = vmatprep.subr.mxu0 0.0
  %931 = vmatpush1.msra.mxu0 0.0
  %932 = vmatprep.subr.mxu0 0.0
  %933 = vmatpush1.msra.mxu0 0.0
  %934 = vmatprep.subr.mxu0 0.0
  %935 = vmatpush1.msra.mxu0 0.0
  %936 = vmatprep.subr.mxu0 0.0
  %937 = vmatpush1.msra.mxu0 0.0
  %938 = vmatprep.subr.mxu0 0.0
  %939 = vmatpush1.msra.mxu0 0.0
  %940 = vmatprep.subr.mxu0 0.0
  %941 = vmatpush1.msra.mxu0 0.0
  %942 = vmatprep.subr.mxu0 0.0
  %943 = vmatpush1.msra.mxu0 0.0
  %944 = vmatprep.subr.mxu0 0.0
  %945 = vmatpush1.msra.mxu0 0.0
  %946 = vmatprep.subr.mxu0 0.0
  %947 = vmatpush1.msra.mxu0 0.0
  %948 = vmatprep.subr.mxu0 0.0
  %949 = vmatpush1.msra.mxu0 0.0
  %950 = vmatprep.mubr.f32.mxu0 0.0
  %951 = vmatmul.mubr.f32.gmra.mrb[0].mxu0 %v884
  %v952 = vpop.f32.mrb[0].mxu0
  %v953 = vadd.f32 %v882, %v952
  %v954 = vpop.f32.mrb[0].mxu0
  %955 = vdwg.mxu0
  %vm956 = vcmask 17408
  %v957 = vsel %vm956, %v953, -inf
  %v958 = vrot.slane %v957, 4
  %v959 = vmax.f32 %v957, %v958
  %v960 = vrot.slane %v959, 2
  %v961 = vmax.f32 %v959, %v960
  %v962 = vrot.slane %v961, 1
  %v963 = vmax.f32 %v961, %v962
  %v964 = vsub.f32 %v953, %v963
  %v965 = vmul.f32 %v964, 1.442695
  %v966 = vpow.pop %v965
  %v967 = vsel %vm956, %v966, 0.0
  %v968 = vrot.slane %v967, 4
  %v969 = vadd.f32 %v967, %v968
  %v970 = vrot.slane %v969, 2
  %v971 = vadd.f32 %v969, %v970
  %v972 = vrot.slane %v971, 1
  %v973 = vadd.f32 %v971, %v972
  %v974 = vrcp.pop %v973
  %v975 = vmul.f32 %v966, %v974
  %976 = vst [vmem:[%s4] sm:$0xff] 0.0
  %977 = vst [vmem:[%s4 + $0x8] sm:$0xff] 0.0
  %vm978 = vcmask 31744
  %979 = vst.msk [vmem:[%s4] sm:$0xff] %vm978, %v859
  %980 = vst.msk [vmem:[%s4 + $0x8] sm:$0xff] %vm978, %v864
  %982 = vrot.lane.b32.xlu0 %v975, 4
  %v983 = vpop.permute.xlu0 %982
  %vm985 = vcmask 50208
  %986 = vst.msk [vmem:[%s4] sm:$0x3] %vm985, %v983
  // Predicated region
  $region18: #{ts_transformer_forward.1} parent=0 // pred_check
    _
  $region19: #{ts_transformer_forward.1} parent=0 // pred_check_branch
    %988 = sbr.rel (0) target = $region21
  $region20: #{ts_transformer_forward.1} parent=0 // pred_region
    _
  $region21: #{ts_transformer_forward.1} parent=0 // pred_fallthru
    _
  // Predicated region
  $region22: #{ts_transformer_forward.1} parent=0 // pred_check
    _
  $region23: #{ts_transformer_forward.1} parent=0 // pred_check_branch
    %990 = sbr.rel (0) target = $region25
  $region24: #{ts_transformer_forward.1} parent=0 // pred_region
    _
  $region25: #{ts_transformer_forward.1} parent=0 // pred_fallthru
    _

</llo_original>
